<compile_context>
chip_gen: v5e
topology: v5e:2x2
jax: 0.10.0
libtpu: 0.0.40
codegen_flags: <defaults>
</compile_context>

<pallas_src>
import functools
import math

import numpy as np
import jax
import jax.numpy as jnp
from jax import lax
from jax.experimental import pallas as pl
from jax.experimental.pallas import tpu as pltpu

_MXU_DTYPE = jnp.bfloat16   # bf16 MXU operands (review item); elementwise stays f32.


def _round_up(v, m):
    return ((v + m - 1) // m) * m


# ------------------------- host-side constant builders ---------------------- #
@functools.lru_cache(maxsize=None)
def _pool_select_matrix(N, H, W, m):
    """One-hot (N*H*W, N*Ho*Wo) matrix gathering each pool window's corner."""
    Ho, Wo = H // m, W // m
    sel = np.zeros((N * H * W, N * Ho * Wo), np.float32)
    for b in range(N):
        for io in range(Ho):
            for jo in range(Wo):
                sel[b * H * W + (io * m) * W + jo * m,
                    b * Ho * Wo + io * Wo + jo] = 1.0
    return jnp.asarray(sel)


@functools.lru_cache(maxsize=None)
def _conv_tap_masks(N, H, W, k):
    """(k*k, N*H*W) 0/1 masks: is tap (di,dj) in-bounds at each output pixel."""
    p = k // 2
    pos = np.arange(N * H * W)
    i = (pos % (H * W)) // W
    j = pos % W
    masks = np.zeros((k * k, N * H * W), np.float32)
    for di in range(k):
        for dj in range(k):
            oi, oj = di - p, dj - p
            ok = (i + oi >= 0) & (i + oi < H) & (j + oj >= 0) & (j + oj < W)
            masks[di * k + dj] = ok.astype(np.float32)
    return jnp.asarray(masks)


@functools.lru_cache(maxsize=None)
def _gap_matrix(N, HW):
    """(N*HW, N) block indicator with 1/HW entries -> per-image spatial mean."""
    blk = np.zeros((N * HW, N), np.float32)
    for b in range(N):
        blk[b * HW:(b + 1) * HW, b] = 1.0 / HW
    return jnp.asarray(blk)


# ------------------------------ in-kernel helpers ---------------------------- #
def _shift_lanes(x, s):
    """y[:, p] = x[:, p + s] (zero fill at the array ends); s is static."""
    if s == 0:
        return x
    c, l = x.shape
    if s > 0:
        return jnp.concatenate([x[:, s:], jnp.zeros((c, s), x.dtype)], axis=1)
    return jnp.concatenate([jnp.zeros((c, -s), x.dtype), x[:, :l + s]], axis=1)


def _fused_kernel(*refs, layer_meta, include_head):
    out_ref = refs[-1]
    x = refs[0][...]                     # (C0p, N*H0*W0): channels x flat pixels
    idx = 1
    for (m, k, W_in, W_conv) in layer_meta:
        # -- MaxPool2d(m, stride=m): max of m*m lane-shifted copies, then one
        #    host-built one-hot matmul compacting the window corners. --
        if m > 1:
            sel = refs[idx][...]
            idx += 1
            pre = x
            for di in range(m):
                for dj in range(m):
                    if di == 0 and dj == 0:
                        continue
                    pre = jnp.maximum(pre, _shift_lanes(x, di * W_in + dj))
            x = jnp.dot(pre.astype(_MXU_DTYPE), sel.astype(_MXU_DTYPE),
                        preferred_element_type=jnp.float32)   # (Cinp, N*Ho*Wo)
        # -- Conv2d(k, padding=k//2) + ReLU, lane-dense:
        #    patches^T (k*k*Cinp, L) from lane shifts * boundary masks,
        #    y^T (Coutp, L) = wT @ patches^T in a single MXU push. --
        masks = refs[idx][...]
        wT = refs[idx + 1][...]
        b = refs[idx + 2][...]
        idx += 3
        pd = k // 2
        taps = []
        for di in range(k):
            for dj in range(k):
                t = di * k + dj
                s = (di - pd) * W_conv + (dj - pd)
                taps.append(_shift_lanes(x, s) * masks[t:t + 1, :])
        patches = jnp.concatenate(taps, axis=0)               # (k*k*Cinp, L)
        y = jnp.dot(wT.astype(_MXU_DTYPE), patches.astype(_MXU_DTYPE),
                    preferred_element_type=jnp.float32)
        x = jnp.maximum(y + b, 0.0)                           # (Coutp, L), f32

    if include_head:
        blk = refs[idx][...]
        fc_wT = refs[idx + 1][...]
        fc_b = refs[idx + 2][...]
        gap = jnp.dot(x, blk, preferred_element_type=jnp.float32)         # (Clp, N)
        out_ref[...] = jnp.dot(fc_wT, gap,
                               preferred_element_type=jnp.float32) + fc_b  # (nc, N)
    else:
        out_ref[...] = x                                      # (Clp, N*Hl*Wl)


# ----------------------------- fused forward wrapper ------------------------- #
def fused_forward(x_nchw, conv_params, fc_params, block_configs, *,
                  include_head, num_classes):
    """x_nchw: (N, C, H, W).
    conv_params: [(wT (Coutp, k*k*Cinp), b (Coutp, 1)), ...] (channel-padded).
    fc_params:   (fc_wT (num_classes, Clp), fc_b (num_classes, 1)).
    """
    N, C, H, W = x_nchw.shape
    Cp = _round_up(C, 8)
    # Lane-dense layout: channels on sublanes, all N*H*W pixels on lanes.
    x2 = jnp.transpose(x_nchw, (1, 0, 2, 3)).reshape(C, N * H * W)
    x2 = jnp.pad(x2.astype(jnp.float32), ((0, Cp - C), (0, 0)))

    inputs = [x2]
    layer_meta = []
    curH, curW = H, W
    for (m, n, k), (wT, b) in zip(block_configs, conv_params):
        assert k % 2 == 1, "only odd conv kernels match PyTorch padding=k//2"
        Ho, Wo = curH // m, curW // m
        if m > 1:
            inputs.append(_pool_select_matrix(N, curH, curW, m))
        inputs.append(_conv_tap_masks(N, Ho, Wo, k))
        inputs += [wT, b]
        layer_meta.append((m, k, curW, Wo))
        curH, curW = Ho, Wo

    last_cout_p = conv_params[-1][0].shape[0]
    if include_head:
        fc_wT, fc_b = fc_params
        inputs.append(_gap_matrix(N, curH * curW))
        inputs += [fc_wT, fc_b]
        out_shape = jax.ShapeDtypeStruct((num_classes, N), jnp.float32)
    else:
        out_shape = jax.ShapeDtypeStruct((last_cout_p, N * curH * curW), jnp.float32)

    in_specs = [pl.BlockSpec(a.shape, lambda i: (0, 0)) for a in inputs]
    out_specs = pl.BlockSpec(out_shape.shape, lambda i: (0, 0))
    kernel = functools.partial(_fused_kernel, layer_meta=tuple(layer_meta),
                               include_head=include_head)
    # Whole batch folded into ONE grid step (no per-step pipeline overhead).
    return pl.pallas_call(
        kernel,
        out_shape=out_shape,
        grid=(1,),
        in_specs=in_specs,
        out_specs=out_specs,
        compiler_params=pltpu.CompilerParams(dimension_semantics=("arbitrary",)),
    )(*inputs)


# ------------------------------ model wrapper -------------------------------- #
class ModularModelPallas:
    def __init__(self, input_channels, block_configs, num_classes, key):
        self.block_configs = [tuple(int(v) for v in c) for c in block_configs]
        self.num_classes = int(num_classes)
        self.conv_params_ref = []      # (OIHW weight, bias) for the pure-JAX reference
        self.conv_params_kernel = []   # (wT (Coutp, k*k*Cinp), b (Coutp, 1)), padded
        c = int(input_channels)
        for (m, n, k) in self.block_configs:
            key, kw, kb = jax.random.split(key, 3)
            bound = 1.0 / math.sqrt(float(c * k * k))
            w = jax.random.uniform(kw, (n, c, k, k), jnp.float32, -bound, bound)  # OIHW
            b = jax.random.uniform(kb, (n,), jnp.float32, -bound, bound)
            self.conv_params_ref.append((w, b))
            cin_p, cout_p = _round_up(c, 8), _round_up(n, 8)
            wT = jnp.zeros((cout_p, k, k, cin_p), jnp.float32)
            wT = wT.at[:n, :, :, :c].set(jnp.transpose(w, (0, 2, 3, 1)))
            wT = wT.reshape(cout_p, k * k * cin_p)
            b_col = jnp.zeros((cout_p, 1), jnp.float32).at[:n, 0].set(b)
            self.conv_params_kernel.append((wT, b_col))
            c = n
        key, kw, kb = jax.random.split(key, 3)
        bound = 1.0 / math.sqrt(float(c))
        self.fc_w = jax.random.uniform(kw, (c, num_classes), jnp.float32, -bound, bound)
        self.fc_b = jax.random.uniform(kb, (num_classes,), jnp.float32, -bound, bound)
        cl_p = _round_up(c, 8)
        fc_wT = jnp.zeros((num_classes, cl_p), jnp.float32).at[:, :c].set(self.fc_w.T)
        self.fc_params_kernel = (fc_wT, self.fc_b.reshape(num_classes, 1))

    def __call__(self, x_nchw, layer_index=None):
        # TODO(synk): torch.no_grad() gating of blocks before layer_index is a
        # training-only detail with no effect on forward values; forward-only here.
        n_blocks = len(self.block_configs) + 1
        if layer_index is None:
            layer_index = n_blocks - 1
        include_head = (layer_index == n_blocks - 1)
        n_conv = len(self.block_configs) if include_head else layer_index + 1
        out = fused_forward(
            x_nchw, self.conv_params_kernel[:n_conv], self.fc_params_kernel,
            self.block_configs[:n_conv],
            include_head=include_head, num_classes=self.num_classes)
        if include_head:
            return out.T                                      # (N, num_classes)
        N, _, curH, curW = x_nchw.shape
        for (m, _, _) in self.block_configs[:n_conv]:
            curH, curW = curH // m, curW // m
        Cl = self.block_configs[n_conv - 1][1]
        out = out[:Cl].reshape(Cl, N, curH, curW)
        return jnp.transpose(out, (1, 0, 2, 3))               # NCHW like PyTorch


# ----------------------------- pure-JAX reference ---------------------------- #
def reference_forward(model, x_nchw, layer_index=None):
    x = x_nchw.astype(jnp.float32)
    n_conv = len(model.block_configs)
    upto = n_conv if (layer_index is None or layer_index >= n_conv) else layer_index + 1
    for (m, n, k), (w, b) in list(zip(model.block_configs,
                                      model.conv_params_ref))[:upto]:
        if m > 1:
            x = lax.reduce_window(x, -jnp.inf, lax.max,
                                  (1, 1, m, m), (1, 1, m, m), "VALID")
        x = lax.conv_general_dilated(x, w, (1, 1), "SAME",
                                     dimension_numbers=("NCHW", "OIHW", "NCHW"))
        x = jnp.maximum(x + b.reshape(1, -1, 1, 1), 0.0)
    if layer_index is not None and layer_index < n_conv:
        return x
    gap = x.mean(axis=(2, 3))
    return gap @ model.fc_w + model.fc_b.reshape(1, -1)


if __name__ == "__main__":
    key = jax.random.PRNGKey(0)
    key, kx, kp = jax.random.split(key, 3)

    # Small shapes consistent with the module: batch=2, channels=4, spatial=16.
    N, Cin, H, W = 2, 4, 16, 16
    block_configs = [(1, 8, 3), (2, 16, 3)]   # (pool m, filters n, kernel k)
    num_classes = 10

    x = jax.random.normal(kx, (N, Cin, H, W), jnp.float32)    # NCHW like PyTorch
    model = ModularModelPallas(Cin, block_configs, num_classes, kp)

    # Full forward (all PoolConv blocks + classifier head).
    out = jax.block_until_ready(model(x))
    ref = jax.block_until_ready(reference_forward(model, x))
    assert out.shape == (N, num_classes), out.shape
    # bf16 MXU operands in the kernel -> loosened tolerance vs. the f32
    # reference (observed error is O(1e-2); structural/indexing bugs would
    # produce O(1) mismatches, so the check still has teeth).
    assert jnp.allclose(out, ref, atol=7e-2, rtol=7e-2), (out, ref)

    # layer_index path: run blocks [0, 1] and return block 1's output (NCHW).
    mid = jax.block_until_ready(model(x, layer_index=1))
    mid_ref = jax.block_until_ready(reference_forward(model, x, layer_index=1))
    assert mid.shape == mid_ref.shape, (mid.shape, mid_ref.shape)
    assert jnp.allclose(mid, mid_ref, atol=7e-2, rtol=7e-2)

    print("KERNEL_OK")
</pallas_src>

<mosaic_0001>
module attributes {stable_mosaic.version = 11 : i64} {
  func.func @_fused_kernel(%arg0: i32, %arg1: memref<8x512xf32, #tpu.memory_space<vmem>>, %arg2: memref<9x512xf32, #tpu.memory_space<vmem>>, %arg3: memref<8x72xf32, #tpu.memory_space<vmem>>, %arg4: memref<8x1xf32, #tpu.memory_space<vmem>>, %arg5: memref<512x128xf32, #tpu.memory_space<vmem>>, %arg6: memref<9x128xf32, #tpu.memory_space<vmem>>, %arg7: memref<16x72xf32, #tpu.memory_space<vmem>>, %arg8: memref<16x1xf32, #tpu.memory_space<vmem>>, %arg9: memref<128x2xf32, #tpu.memory_space<vmem>>, %arg10: memref<10x16xf32, #tpu.memory_space<vmem>>, %arg11: memref<10x1xf32, #tpu.memory_space<vmem>>, %arg12: memref<10x2xf32, #tpu.memory_space<vmem>>) attributes {dimension_semantics = [#tpu.dimension_semantics<arbitrary>], iteration_bounds = array<i64: 1>, scalar_prefetch = 0 : i64, scratch_operands = 0 : i64, tpu.core_type = #tpu.core_type<tc>, window_params = [{pipeline_mode = #tpu.pipeline_mode<synchronous>, transform_indices = @transform_0, window_bounds = array<i64: 8, 512>}, {pipeline_mode = #tpu.pipeline_mode<synchronous>, transform_indices = @transform_1, window_bounds = array<i64: 9, 512>}, {pipeline_mode = #tpu.pipeline_mode<synchronous>, transform_indices = @transform_2, window_bounds = array<i64: 8, 72>}, {pipeline_mode = #tpu.pipeline_mode<synchronous>, transform_indices = @transform_3, window_bounds = array<i64: 8, 1>}, {pipeline_mode = #tpu.pipeline_mode<synchronous>, transform_indices = @transform_4, window_bounds = array<i64: 512, 128>}, {pipeline_mode = #tpu.pipeline_mode<synchronous>, transform_indices = @transform_5, window_bounds = array<i64: 9, 128>}, {pipeline_mode = #tpu.pipeline_mode<synchronous>, transform_indices = @transform_6, window_bounds = array<i64: 16, 72>}, {pipeline_mode = #tpu.pipeline_mode<synchronous>, transform_indices = @transform_7, window_bounds = array<i64: 16, 1>}, {pipeline_mode = #tpu.pipeline_mode<synchronous>, transform_indices = @transform_8, window_bounds = array<i64: 128, 2>}, {pipeline_mode = #tpu.pipeline_mode<synchronous>, transform_indices = @transform_9, window_bounds = array<i64: 10, 16>}, {pipeline_mode = #tpu.pipeline_mode<synchronous>, transform_indices = @transform_10, window_bounds = array<i64: 10, 1>}, {pipeline_mode = #tpu.pipeline_mode<synchronous>, transform_indices = @transform_11, window_bounds = array<i64: 10, 2>}]} {
    %c0 = arith.constant 0 : index
    %c0_0 = arith.constant 0 : index
    %0 = vector.load %arg1[%c0, %c0_0] : memref<8x512xf32, #tpu.memory_space<vmem>>, vector<8x512xf32>
    %c0_1 = arith.constant 0 : index
    %c0_2 = arith.constant 0 : index
    %1 = vector.load %arg2[%c0_1, %c0_2] : memref<9x512xf32, #tpu.memory_space<vmem>>, vector<9x512xf32>
    %c0_3 = arith.constant 0 : index
    %c0_4 = arith.constant 0 : index
    %2 = vector.load %arg3[%c0_3, %c0_4] : memref<8x72xf32, #tpu.memory_space<vmem>>, vector<8x72xf32>
    %c0_5 = arith.constant 0 : index
    %c0_6 = arith.constant 0 : index
    %3 = vector.load %arg4[%c0_5, %c0_6] : memref<8x1xf32, #tpu.memory_space<vmem>>, vector<8x1xf32>
    %cst = arith.constant 0.000000e+00 : f32
    %4 = vector.broadcast %cst : f32 to vector<8x17xf32>
    %5 = vector.extract_strided_slice %0 {offsets = [0, 0], sizes = [8, 495], strides = [1, 1]} : vector<8x512xf32> to vector<8x495xf32>
    %6 = tpu.concatenate %4, %5 in 1 : vector<8x17xf32>, vector<8x495xf32> -> vector<8x512xf32>
    %7 = vector.extract_strided_slice %1 {offsets = [0, 0], sizes = [1, 512], strides = [1, 1]} : vector<9x512xf32> to vector<1x512xf32>
    %8 = vector.broadcast %7 : vector<1x512xf32> to vector<8x512xf32>
    %9 = arith.mulf %6, %8 : vector<8x512xf32>
    %cst_7 = arith.constant 0.000000e+00 : f32
    %10 = vector.broadcast %cst_7 : f32 to vector<8x16xf32>
    %11 = vector.extract_strided_slice %0 {offsets = [0, 0], sizes = [8, 496], strides = [1, 1]} : vector<8x512xf32> to vector<8x496xf32>
    %12 = tpu.concatenate %10, %11 in 1 : vector<8x16xf32>, vector<8x496xf32> -> vector<8x512xf32>
    %13 = vector.extract_strided_slice %1 {offsets = [1, 0], sizes = [1, 512], strides = [1, 1]} : vector<9x512xf32> to vector<1x512xf32>
    %14 = vector.broadcast %13 : vector<1x512xf32> to vector<8x512xf32>
    %15 = arith.mulf %12, %14 : vector<8x512xf32>
    %cst_8 = arith.constant 0.000000e+00 : f32
    %16 = vector.broadcast %cst_8 : f32 to vector<8x15xf32>
    %17 = vector.extract_strided_slice %0 {offsets = [0, 0], sizes = [8, 497], strides = [1, 1]} : vector<8x512xf32> to vector<8x497xf32>
    %18 = tpu.concatenate %16, %17 in 1 : vector<8x15xf32>, vector<8x497xf32> -> vector<8x512xf32>
    %19 = vector.extract_strided_slice %1 {offsets = [2, 0], sizes = [1, 512], strides = [1, 1]} : vector<9x512xf32> to vector<1x512xf32>
    %20 = vector.broadcast %19 : vector<1x512xf32> to vector<8x512xf32>
    %21 = arith.mulf %18, %20 : vector<8x512xf32>
    %cst_9 = arith.constant 0.000000e+00 : f32
    %22 = vector.broadcast %cst_9 : f32 to vector<8x1xf32>
    %23 = vector.extract_strided_slice %0 {offsets = [0, 0], sizes = [8, 511], strides = [1, 1]} : vector<8x512xf32> to vector<8x511xf32>
    %24 = tpu.concatenate %22, %23 in 1 : vector<8x1xf32>, vector<8x511xf32> -> vector<8x512xf32>
    %25 = vector.extract_strided_slice %1 {offsets = [3, 0], sizes = [1, 512], strides = [1, 1]} : vector<9x512xf32> to vector<1x512xf32>
    %26 = vector.broadcast %25 : vector<1x512xf32> to vector<8x512xf32>
    %27 = arith.mulf %24, %26 : vector<8x512xf32>
    %28 = vector.extract_strided_slice %1 {offsets = [4, 0], sizes = [1, 512], strides = [1, 1]} : vector<9x512xf32> to vector<1x512xf32>
    %29 = vector.broadcast %28 : vector<1x512xf32> to vector<8x512xf32>
    %30 = arith.mulf %0, %29 : vector<8x512xf32>
    %31 = vector.extract_strided_slice %0 {offsets = [0, 1], sizes = [8, 511], strides = [1, 1]} : vector<8x512xf32> to vector<8x511xf32>
    %cst_10 = arith.constant 0.000000e+00 : f32
    %32 = vector.broadcast %cst_10 : f32 to vector<8x1xf32>
    %33 = tpu.concatenate %31, %32 in 1 : vector<8x511xf32>, vector<8x1xf32> -> vector<8x512xf32>
    %34 = vector.extract_strided_slice %1 {offsets = [5, 0], sizes = [1, 512], strides = [1, 1]} : vector<9x512xf32> to vector<1x512xf32>
    %35 = vector.broadcast %34 : vector<1x512xf32> to vector<8x512xf32>
    %36 = arith.mulf %33, %35 : vector<8x512xf32>
    %37 = vector.extract_strided_slice %0 {offsets = [0, 15], sizes = [8, 497], strides = [1, 1]} : vector<8x512xf32> to vector<8x497xf32>
    %cst_11 = arith.constant 0.000000e+00 : f32
    %38 = vector.broadcast %cst_11 : f32 to vector<8x15xf32>
    %39 = tpu.concatenate %37, %38 in 1 : vector<8x497xf32>, vector<8x15xf32> -> vector<8x512xf32>
    %40 = vector.extract_strided_slice %1 {offsets = [6, 0], sizes = [1, 512], strides = [1, 1]} : vector<9x512xf32> to vector<1x512xf32>
    %41 = vector.broadcast %40 : vector<1x512xf32> to vector<8x512xf32>
    %42 = arith.mulf %39, %41 : vector<8x512xf32>
    %43 = vector.extract_strided_slice %0 {offsets = [0, 16], sizes = [8, 496], strides = [1, 1]} : vector<8x512xf32> to vector<8x496xf32>
    %cst_12 = arith.constant 0.000000e+00 : f32
    %44 = vector.broadcast %cst_12 : f32 to vector<8x16xf32>
    %45 = tpu.concatenate %43, %44 in 1 : vector<8x496xf32>, vector<8x16xf32> -> vector<8x512xf32>
    %46 = vector.extract_strided_slice %1 {offsets = [7, 0], sizes = [1, 512], strides = [1, 1]} : vector<9x512xf32> to vector<1x512xf32>
    %47 = vector.broadcast %46 : vector<1x512xf32> to vector<8x512xf32>
    %48 = arith.mulf %45, %47 : vector<8x512xf32>
    %49 = vector.extract_strided_slice %0 {offsets = [0, 17], sizes = [8, 495], strides = [1, 1]} : vector<8x512xf32> to vector<8x495xf32>
    %cst_13 = arith.constant 0.000000e+00 : f32
    %50 = vector.broadcast %cst_13 : f32 to vector<8x17xf32>
    %51 = tpu.concatenate %49, %50 in 1 : vector<8x495xf32>, vector<8x17xf32> -> vector<8x512xf32>
    %52 = vector.extract_strided_slice %1 {offsets = [8, 0], sizes = [1, 512], strides = [1, 1]} : vector<9x512xf32> to vector<1x512xf32>
    %53 = vector.broadcast %52 : vector<1x512xf32> to vector<8x512xf32>
    %54 = arith.mulf %51, %53 : vector<8x512xf32>
    %55 = tpu.concatenate %9, %15, %21, %27, %30, %36, %42, %48, %54 in 0 : vector<8x512xf32>, vector<8x512xf32>, vector<8x512xf32>, vector<8x512xf32>, vector<8x512xf32>, vector<8x512xf32>, vector<8x512xf32>, vector<8x512xf32>, vector<8x512xf32> -> vector<72x512xf32>
    %56 = arith.truncf %2 : vector<8x72xf32> to vector<8x72xbf16>
    %57 = arith.truncf %55 : vector<72x512xf32> to vector<72x512xbf16>
    %cst_14 = arith.constant dense<0.000000e+00> : vector<8x512xf32>
    %58 = tpu.matmul %56, %57, %cst_14 {dimension_numbers = #tpu.dot_dimension_numbers<[1], [0], [0], [1], [0, 0, 1, 1], [], []>} : vector<8x72xbf16>, vector<72x512xbf16>, vector<8x512xf32> -> vector<8x512xf32>
    %59 = vector.broadcast %3 : vector<8x1xf32> to vector<8x512xf32>
    %60 = arith.addf %58, %59 : vector<8x512xf32>
    %cst_15 = arith.constant 0.000000e+00 : f32
    %61 = vector.broadcast %cst_15 : f32 to vector<8x512xf32>
    %62 = arith.maximumf %60, %61 : vector<8x512xf32>
    %c0_16 = arith.constant 0 : index
    %c0_17 = arith.constant 0 : index
    %63 = vector.load %arg5[%c0_16, %c0_17] : memref<512x128xf32, #tpu.memory_space<vmem>>, vector<512x128xf32>
    %64 = vector.extract_strided_slice %62 {offsets = [0, 1], sizes = [8, 511], strides = [1, 1]} : vector<8x512xf32> to vector<8x511xf32>
    %cst_18 = arith.constant 0.000000e+00 : f32
    %65 = vector.broadcast %cst_18 : f32 to vector<8x1xf32>
    %66 = tpu.concatenate %64, %65 in 1 : vector<8x511xf32>, vector<8x1xf32> -> vector<8x512xf32>
    %67 = arith.maximumf %62, %66 : vector<8x512xf32>
    %68 = vector.extract_strided_slice %62 {offsets = [0, 16], sizes = [8, 496], strides = [1, 1]} : vector<8x512xf32> to vector<8x496xf32>
    %cst_19 = arith.constant 0.000000e+00 : f32
    %69 = vector.broadcast %cst_19 : f32 to vector<8x16xf32>
    %70 = tpu.concatenate %68, %69 in 1 : vector<8x496xf32>, vector<8x16xf32> -> vector<8x512xf32>
    %71 = arith.maximumf %67, %70 : vector<8x512xf32>
    %72 = vector.extract_strided_slice %62 {offsets = [0, 17], sizes = [8, 495], strides = [1, 1]} : vector<8x512xf32> to vector<8x495xf32>
    %cst_20 = arith.constant 0.000000e+00 : f32
    %73 = vector.broadcast %cst_20 : f32 to vector<8x17xf32>
    %74 = tpu.concatenate %72, %73 in 1 : vector<8x495xf32>, vector<8x17xf32> -> vector<8x512xf32>
    %75 = arith.maximumf %71, %74 : vector<8x512xf32>
    %76 = arith.truncf %75 : vector<8x512xf32> to vector<8x512xbf16>
    %77 = arith.truncf %63 : vector<512x128xf32> to vector<512x128xbf16>
    %cst_21 = arith.constant dense<0.000000e+00> : vector<8x128xf32>
    %78 = tpu.matmul %76, %77, %cst_21 {dimension_numbers = #tpu.dot_dimension_numbers<[1], [0], [0], [1], [0, 0, 1, 1], [], []>} : vector<8x512xbf16>, vector<512x128xbf16>, vector<8x128xf32> -> vector<8x128xf32>
    %c0_22 = arith.constant 0 : index
    %c0_23 = arith.constant 0 : index
    %79 = vector.load %arg6[%c0_22, %c0_23] : memref<9x128xf32, #tpu.memory_space<vmem>>, vector<9x128xf32>
    %c0_24 = arith.constant 0 : index
    %c0_25 = arith.constant 0 : index
    %80 = vector.load %arg7[%c0_24, %c0_25] : memref<16x72xf32, #tpu.memory_space<vmem>>, vector<16x72xf32>
    %c0_26 = arith.constant 0 : index
    %c0_27 = arith.constant 0 : index
    %81 = vector.load %arg8[%c0_26, %c0_27] : memref<16x1xf32, #tpu.memory_space<vmem>>, vector<16x1xf32>
    %cst_28 = arith.constant 0.000000e+00 : f32
    %82 = vector.broadcast %cst_28 : f32 to vector<8x9xf32>
    %83 = vector.extract_strided_slice %78 {offsets = [0, 0], sizes = [8, 119], strides = [1, 1]} : vector<8x128xf32> to vector<8x119xf32>
    %84 = tpu.concatenate %82, %83 in 1 : vector<8x9xf32>, vector<8x119xf32> -> vector<8x128xf32>
    %85 = vector.extract_strided_slice %79 {offsets = [0, 0], sizes = [1, 128], strides = [1, 1]} : vector<9x128xf32> to vector<1x128xf32>
    %86 = vector.broadcast %85 : vector<1x128xf32> to vector<8x128xf32>
    %87 = arith.mulf %84, %86 : vector<8x128xf32>
    %cst_29 = arith.constant 0.000000e+00 : f32
    %88 = vector.broadcast %cst_29 : f32 to vector<8x8xf32>
    %89 = vector.extract_strided_slice %78 {offsets = [0, 0], sizes = [8, 120], strides = [1, 1]} : vector<8x128xf32> to vector<8x120xf32>
    %90 = tpu.concatenate %88, %89 in 1 : vector<8x8xf32>, vector<8x120xf32> -> vector<8x128xf32>
    %91 = vector.extract_strided_slice %79 {offsets = [1, 0], sizes = [1, 128], strides = [1, 1]} : vector<9x128xf32> to vector<1x128xf32>
    %92 = vector.broadcast %91 : vector<1x128xf32> to vector<8x128xf32>
    %93 = arith.mulf %90, %92 : vector<8x128xf32>
    %cst_30 = arith.constant 0.000000e+00 : f32
    %94 = vector.broadcast %cst_30 : f32 to vector<8x7xf32>
    %95 = vector.extract_strided_slice %78 {offsets = [0, 0], sizes = [8, 121], strides = [1, 1]} : vector<8x128xf32> to vector<8x121xf32>
    %96 = tpu.concatenate %94, %95 in 1 : vector<8x7xf32>, vector<8x121xf32> -> vector<8x128xf32>
    %97 = vector.extract_strided_slice %79 {offsets = [2, 0], sizes = [1, 128], strides = [1, 1]} : vector<9x128xf32> to vector<1x128xf32>
    %98 = vector.broadcast %97 : vector<1x128xf32> to vector<8x128xf32>
    %99 = arith.mulf %96, %98 : vector<8x128xf32>
    %cst_31 = arith.constant 0.000000e+00 : f32
    %100 = vector.broadcast %cst_31 : f32 to vector<8x1xf32>
    %101 = vector.extract_strided_slice %78 {offsets = [0, 0], sizes = [8, 127], strides = [1, 1]} : vector<8x128xf32> to vector<8x127xf32>
    %102 = tpu.concatenate %100, %101 in 1 : vector<8x1xf32>, vector<8x127xf32> -> vector<8x128xf32>
    %103 = vector.extract_strided_slice %79 {offsets = [3, 0], sizes = [1, 128], strides = [1, 1]} : vector<9x128xf32> to vector<1x128xf32>
    %104 = vector.broadcast %103 : vector<1x128xf32> to vector<8x128xf32>
    %105 = arith.mulf %102, %104 : vector<8x128xf32>
    %106 = vector.extract_strided_slice %79 {offsets = [4, 0], sizes = [1, 128], strides = [1, 1]} : vector<9x128xf32> to vector<1x128xf32>
    %107 = vector.broadcast %106 : vector<1x128xf32> to vector<8x128xf32>
    %108 = arith.mulf %78, %107 : vector<8x128xf32>
    %109 = vector.extract_strided_slice %78 {offsets = [0, 1], sizes = [8, 127], strides = [1, 1]} : vector<8x128xf32> to vector<8x127xf32>
    %cst_32 = arith.constant 0.000000e+00 : f32
    %110 = vector.broadcast %cst_32 : f32 to vector<8x1xf32>
    %111 = tpu.concatenate %109, %110 in 1 : vector<8x127xf32>, vector<8x1xf32> -> vector<8x128xf32>
    %112 = vector.extract_strided_slice %79 {offsets = [5, 0], sizes = [1, 128], strides = [1, 1]} : vector<9x128xf32> to vector<1x128xf32>
    %113 = vector.broadcast %112 : vector<1x128xf32> to vector<8x128xf32>
    %114 = arith.mulf %111, %113 : vector<8x128xf32>
    %115 = vector.extract_strided_slice %78 {offsets = [0, 7], sizes = [8, 121], strides = [1, 1]} : vector<8x128xf32> to vector<8x121xf32>
    %cst_33 = arith.constant 0.000000e+00 : f32
    %116 = vector.broadcast %cst_33 : f32 to vector<8x7xf32>
    %117 = tpu.concatenate %115, %116 in 1 : vector<8x121xf32>, vector<8x7xf32> -> vector<8x128xf32>
    %118 = vector.extract_strided_slice %79 {offsets = [6, 0], sizes = [1, 128], strides = [1, 1]} : vector<9x128xf32> to vector<1x128xf32>
    %119 = vector.broadcast %118 : vector<1x128xf32> to vector<8x128xf32>
    %120 = arith.mulf %117, %119 : vector<8x128xf32>
    %121 = vector.extract_strided_slice %78 {offsets = [0, 8], sizes = [8, 120], strides = [1, 1]} : vector<8x128xf32> to vector<8x120xf32>
    %cst_34 = arith.constant 0.000000e+00 : f32
    %122 = vector.broadcast %cst_34 : f32 to vector<8x8xf32>
    %123 = tpu.concatenate %121, %122 in 1 : vector<8x120xf32>, vector<8x8xf32> -> vector<8x128xf32>
    %124 = vector.extract_strided_slice %79 {offsets = [7, 0], sizes = [1, 128], strides = [1, 1]} : vector<9x128xf32> to vector<1x128xf32>
    %125 = vector.broadcast %124 : vector<1x128xf32> to vector<8x128xf32>
    %126 = arith.mulf %123, %125 : vector<8x128xf32>
    %127 = vector.extract_strided_slice %78 {offsets = [0, 9], sizes = [8, 119], strides = [1, 1]} : vector<8x128xf32> to vector<8x119xf32>
    %cst_35 = arith.constant 0.000000e+00 : f32
    %128 = vector.broadcast %cst_35 : f32 to vector<8x9xf32>
    %129 = tpu.concatenate %127, %128 in 1 : vector<8x119xf32>, vector<8x9xf32> -> vector<8x128xf32>
    %130 = vector.extract_strided_slice %79 {offsets = [8, 0], sizes = [1, 128], strides = [1, 1]} : vector<9x128xf32> to vector<1x128xf32>
    %131 = vector.broadcast %130 : vector<1x128xf32> to vector<8x128xf32>
    %132 = arith.mulf %129, %131 : vector<8x128xf32>
    %133 = tpu.concatenate %87, %93, %99, %105, %108, %114, %120, %126, %132 in 0 : vector<8x128xf32>, vector<8x128xf32>, vector<8x128xf32>, vector<8x128xf32>, vector<8x128xf32>, vector<8x128xf32>, vector<8x128xf32>, vector<8x128xf32>, vector<8x128xf32> -> vector<72x128xf32>
    %134 = arith.truncf %80 : vector<16x72xf32> to vector<16x72xbf16>
    %135 = arith.truncf %133 : vector<72x128xf32> to vector<72x128xbf16>
    %cst_36 = arith.constant dense<0.000000e+00> : vector<16x128xf32>
    %136 = tpu.matmul %134, %135, %cst_36 {dimension_numbers = #tpu.dot_dimension_numbers<[1], [0], [0], [1], [0, 0, 1, 1], [], []>} : vector<16x72xbf16>, vector<72x128xbf16>, vector<16x128xf32> -> vector<16x128xf32>
    %137 = vector.broadcast %81 : vector<16x1xf32> to vector<16x128xf32>
    %138 = arith.addf %136, %137 : vector<16x128xf32>
    %cst_37 = arith.constant 0.000000e+00 : f32
    %139 = vector.broadcast %cst_37 : f32 to vector<16x128xf32>
    %140 = arith.maximumf %138, %139 : vector<16x128xf32>
    %c0_38 = arith.constant 0 : index
    %c0_39 = arith.constant 0 : index
    %141 = vector.load %arg9[%c0_38, %c0_39] : memref<128x2xf32, #tpu.memory_space<vmem>>, vector<128x2xf32>
    %c0_40 = arith.constant 0 : index
    %c0_41 = arith.constant 0 : index
    %142 = vector.load %arg10[%c0_40, %c0_41] : memref<10x16xf32, #tpu.memory_space<vmem>>, vector<10x16xf32>
    %c0_42 = arith.constant 0 : index
    %c0_43 = arith.constant 0 : index
    %143 = vector.load %arg11[%c0_42, %c0_43] : memref<10x1xf32, #tpu.memory_space<vmem>>, vector<10x1xf32>
    %cst_44 = arith.constant dense<0.000000e+00> : vector<16x2xf32>
    %144 = tpu.matmul %140, %141, %cst_44 {dimension_numbers = #tpu.dot_dimension_numbers<[1], [0], [0], [1], [0, 0, 1, 1], [], []>} : vector<16x128xf32>, vector<128x2xf32>, vector<16x2xf32> -> vector<16x2xf32>
    %cst_45 = arith.constant dense<0.000000e+00> : vector<10x2xf32>
    %145 = tpu.matmul %142, %144, %cst_45 {dimension_numbers = #tpu.dot_dimension_numbers<[1], [0], [0], [1], [0, 0, 1, 1], [], []>} : vector<10x16xf32>, vector<16x2xf32>, vector<10x2xf32> -> vector<10x2xf32>
    %146 = vector.broadcast %143 : vector<10x1xf32> to vector<10x2xf32>
    %147 = arith.addf %145, %146 : vector<10x2xf32>
    %c0_46 = arith.constant 0 : index
    %c0_47 = arith.constant 0 : index
    %148 = vector.load %arg12[%c0_46, %c0_47] : memref<10x2xf32, #tpu.memory_space<vmem>>, vector<10x2xf32>
    tpu.vector_store %arg12[%c0_46, %c0_47], %147 {strides = array<i32>} : memref<10x2xf32, #tpu.memory_space<vmem>>, vector<10x2xf32>,
    return
  }
  func.func @transform_0(%arg0: i32) -> (i32, i32) {
    %c0_i32 = arith.constant 0 : i32
    %c0_i32_0 = arith.constant 0 : i32
    %c0_i32_1 = arith.constant 0 : i32
    return %c0_i32, %c0_i32_0 : i32, i32
  }
  func.func @transform_1(%arg0: i32) -> (i32, i32) {
    %c0_i32 = arith.constant 0 : i32
    %c0_i32_0 = arith.constant 0 : i32
    %c0_i32_1 = arith.constant 0 : i32
    return %c0_i32, %c0_i32_0 : i32, i32
  }
  func.func @transform_2(%arg0: i32) -> (i32, i32) {
    %c0_i32 = arith.constant 0 : i32
    %c0_i32_0 = arith.constant 0 : i32
    %c0_i32_1 = arith.constant 0 : i32
    return %c0_i32, %c0_i32_0 : i32, i32
  }
  func.func @transform_3(%arg0: i32) -> (i32, i32) {
    %c0_i32 = arith.constant 0 : i32
    %c0_i32_0 = arith.constant 0 : i32
    %c0_i32_1 = arith.constant 0 : i32
    return %c0_i32, %c0_i32_0 : i32, i32
  }
  func.func @transform_4(%arg0: i32) -> (i32, i32) {
    %c0_i32 = arith.constant 0 : i32
    %c0_i32_0 = arith.constant 0 : i32
    %c0_i32_1 = arith.constant 0 : i32
    return %c0_i32, %c0_i32_0 : i32, i32
  }
  func.func @transform_5(%arg0: i32) -> (i32, i32) {
    %c0_i32 = arith.constant 0 : i32
    %c0_i32_0 = arith.constant 0 : i32
    %c0_i32_1 = arith.constant 0 : i32
    return %c0_i32, %c0_i32_0 : i32, i32
  }
  func.func @transform_6(%arg0: i32) -> (i32, i32) {
    %c0_i32 = arith.constant 0 : i32
    %c0_i32_0 = arith.constant 0 : i32
    %c0_i32_1 = arith.constant 0 : i32
    return %c0_i32, %c0_i32_0 : i32, i32
  }
  func.func @transform_7(%arg0: i32) -> (i32, i32) {
    %c0_i32 = arith.constant 0 : i32
    %c0_i32_0 = arith.constant 0 : i32
    %c0_i32_1 = arith.constant 0 : i32
    return %c0_i32, %c0_i32_0 : i32, i32
  }
  func.func @transform_8(%arg0: i32) -> (i32, i32) {
    %c0_i32 = arith.constant 0 : i32
    %c0_i32_0 = arith.constant 0 : i32
    %c0_i32_1 = arith.constant 0 : i32
    return %c0_i32, %c0_i32_0 : i32, i32
  }
  func.func @transform_9(%arg0: i32) -> (i32, i32) {
    %c0_i32 = arith.constant 0 : i32
    %c0_i32_0 = arith.constant 0 : i32
    %c0_i32_1 = arith.constant 0 : i32
    return %c0_i32, %c0_i32_0 : i32, i32
  }
  func.func @transform_10(%arg0: i32) -> (i32, i32) {
    %c0_i32 = arith.constant 0 : i32
    %c0_i32_0 = arith.constant 0 : i32
    %c0_i32_1 = arith.constant 0 : i32
    return %c0_i32, %c0_i32_0 : i32, i32
  }
  func.func @transform_11(%arg0: i32) -> (i32, i32) {
    %c0_i32 = arith.constant 0 : i32
    %c0_i32_0 = arith.constant 0 : i32
    %c0_i32_1 = arith.constant 0 : i32
    return %c0_i32, %c0_i32_0 : i32, i32
  }
}

</mosaic_0001>

<llo_original>
// kernel: tpu_custom_call.1
$region0: #{tpu_custom_call.1}
  #allocation0 [shape = 'u32[]', space=smem, size = 0x4, offset = 0x4, fixed_abs, tag = 'smem constant byte address 0x4 - core index']
  #allocation1 [shape = 'u32[72,128]{1,0:T(1,128)}', space=vmem, size = 0x9000, scoped, tag = 'internal scratch']
  %s0 = inlined_call_operand.vmem [shape: f32[8,512], index: 0, kind: input, shape index: {}]
  %s1 = inlined_call_operand.vmem [shape: f32[9,512], index: 1, kind: input, shape index: {}]
  %s2 = inlined_call_operand.vmem [shape: f32[8,72], index: 2, kind: input, shape index: {}]
  %s3 = inlined_call_operand.vmem [shape: f32[8,1], index: 3, kind: input, shape index: {}]
  %s4 = inlined_call_operand.hbm [shape: f32[512,128], index: 4, kind: input, shape index: {}]
  %s5 = inlined_call_operand.vmem [shape: f32[9,128], index: 5, kind: input, shape index: {}]
  %s6 = inlined_call_operand.vmem [shape: f32[16,72], index: 6, kind: input, shape index: {}]
  %s7 = inlined_call_operand.vmem [shape: f32[16,1], index: 7, kind: input, shape index: {}]
  %s8 = inlined_call_operand.vmem [shape: f32[128,2], index: 8, kind: input, shape index: {}]
  %s9 = inlined_call_operand.vmem [shape: f32[10,16], index: 9, kind: input, shape index: {}]
  %s10 = inlined_call_operand.vmem [shape: f32[10,1], index: 10, kind: input, shape index: {}]
  %s11 = inlined_call_operand.vmem [shape: f32[10,2], index: 11, kind: output, shape index: {}]
  %s12 = sld [smem:[#allocation0]]
  $region58: #{tpu_custom_call.1} parent=0
    _
  %s14 = ssub.s32 1, %s12
  %s15 = scalar_select 0, %s14, %s12
  $region1: #{tpu_custom_call.1} parent=0
    #allocation2 [shape = 'u8[262144]{0}', space=vmem, size = 0x40000, scoped, tag = 'input window, operand 4, single buffered']
    #allocation3 [shape = 's32[1]{0}', space=sflag, size = 0x4, scoped, tag = 'scoped memory for tpu_custom_call.1']
    %16 = vsyncpa [#allocation3], 0
    // Predicated region
    $region2: #{tpu_custom_call.1} parent=1 // pred_check
      _
    $region3: #{tpu_custom_call.1} parent=1 // pred_check_branch
      %18 = sbr.rel (0) target = $region5
    $region4: #{tpu_custom_call.1} parent=1 // pred_region
      _
    $region5: #{tpu_custom_call.1} parent=1 // pred_fallthru
      _
    // Predicated region
    $region6: #{tpu_custom_call.1} parent=1 // pred_check
      _
    $region7: #{tpu_custom_call.1} parent=1 // pred_check_branch
      %20 = sbr.rel (0) target = $region9
    $region8: #{tpu_custom_call.1} parent=1 // pred_region
      _
    $region9: #{tpu_custom_call.1} parent=1 // pred_fallthru
      _
    // Predicated region
    $region10: #{tpu_custom_call.1} parent=1 // pred_check
      _
    $region11: #{tpu_custom_call.1} parent=1 // pred_check_branch
      %22 = sbr.rel (0) target = $region13
    $region12: #{tpu_custom_call.1} parent=1 // pred_region
      _
    $region13: #{tpu_custom_call.1} parent=1 // pred_fallthru
      _
    // Predicated region
    $region14: #{tpu_custom_call.1} parent=1 // pred_check
      _
    $region15: #{tpu_custom_call.1} parent=1 // pred_check_branch
      %24 = sbr.rel (0) target = $region17
    $region16: #{tpu_custom_call.1} parent=1 // pred_region
      _
    $region17: #{tpu_custom_call.1} parent=1 // pred_fallthru
      _
    // Predicated region
    $region18: #{tpu_custom_call.1} parent=1 // pred_check
      _
    $region19: #{tpu_custom_call.1} parent=1 // pred_check_branch
      %26 = sbr.rel (0) target = $region21
    $region20: #{tpu_custom_call.1} parent=1 // pred_region
      %28 = vsyncadd [#allocation3], 0
      %s29 = sshll.u32 %s4, 4
      %s30 = int_to_ptr.hbm [resolvable:$true] %s29
      %s31 = sshll.u32 [#allocation2], 4
      %s32 = int_to_ptr.vmem [resolvable:$true] %s31
      %37 = dma.hbm_to_vmem [thread:$0]  %s30, 8192, %s32, [#allocation3], 128, 128, 8
    $region21: #{tpu_custom_call.1} parent=1 // pred_fallthru
      _
    // Predicated region
    $region22: #{tpu_custom_call.1} parent=1 // pred_check
      _
    $region23: #{tpu_custom_call.1} parent=1 // pred_check_branch
      %39 = sbr.rel (0) target = $region25
    $region24: #{tpu_custom_call.1} parent=1 // pred_region
      _
    $region25: #{tpu_custom_call.1} parent=1 // pred_fallthru
      _
    // Predicated region
    $region26: #{tpu_custom_call.1} parent=1 // pred_check
      _
    $region27: #{tpu_custom_call.1} parent=1 // pred_check_branch
      %41 = sbr.rel (0) target = $region29
    $region28: #{tpu_custom_call.1} parent=1 // pred_region
      _
    $region29: #{tpu_custom_call.1} parent=1 // pred_fallthru
      _
    // Predicated region
    $region30: #{tpu_custom_call.1} parent=1 // pred_check
      _
    $region31: #{tpu_custom_call.1} parent=1 // pred_check_branch
      %43 = sbr.rel (0) target = $region33
    $region32: #{tpu_custom_call.1} parent=1 // pred_region
      _
    $region33: #{tpu_custom_call.1} parent=1 // pred_fallthru
      _
    // Predicated region
    $region34: #{tpu_custom_call.1} parent=1 // pred_check
      _
    $region35: #{tpu_custom_call.1} parent=1 // pred_check_branch
      %45 = sbr.rel (0) target = $region37
    $region36: #{tpu_custom_call.1} parent=1 // pred_region
      _
    $region37: #{tpu_custom_call.1} parent=1 // pred_fallthru
      _
    // Predicated region
    $region38: #{tpu_custom_call.1} parent=1 // pred_check
      _
    $region39: #{tpu_custom_call.1} parent=1 // pred_check_branch
      %47 = sbr.rel (0) target = $region41
    $region40: #{tpu_custom_call.1} parent=1 // pred_region
      _
    $region41: #{tpu_custom_call.1} parent=1 // pred_fallthru
      _
    // Predicated region
    $region42: #{tpu_custom_call.1} parent=1 // pred_check
      _
    $region43: #{tpu_custom_call.1} parent=1 // pred_check_branch
      %49 = sbr.rel (0) target = $region45
    $region44: #{tpu_custom_call.1} parent=1 // pred_region
      _
    $region45: #{tpu_custom_call.1} parent=1 // pred_fallthru
      _
    // Predicated region
    $region46: #{tpu_custom_call.1} parent=1 // pred_check
      _
    $region47: #{tpu_custom_call.1} parent=1 // pred_check_branch
      %51 = sbr.rel (0) target = $region49
    $region48: #{tpu_custom_call.1} parent=1 // pred_region
      %53 = dma.done [#allocation3], 8192
    $region49: #{tpu_custom_call.1} parent=1 // pred_fallthru
      _
    %v55 = vld [vmem:[%s0] sm:$0xff]
    %v56 = vld [vmem:[%s0 + $0x8] sm:$0xff]
    %v57 = vld [vmem:[%s0 + $0x10] sm:$0xff]
    %v58 = vld [vmem:[%s0 + $0x18] sm:$0xff]
    %v59 = vld [vmem:[%s1] sm:$0xff]
    %v60 = vld [vmem:[%s1 + $0x8] sm:$0xff]
    %v61 = vld [vmem:[%s1 + $0x10] sm:$0xff]
    %v62 = vld [vmem:[%s1 + $0x18] sm:$0xff]
    %v63 = vld [vmem:[%s1 + $0x20] sm:$0x1]
    %v64 = vld [vmem:[%s1 + $0x28] sm:$0x1]
    %v65 = vld [vmem:[%s1 + $0x30] sm:$0x1]
    %v66 = vld [vmem:[%s1 + $0x38] sm:$0x1]
    %v67 = vld [vmem:[%s2] sm:$0xff]
    %v68 = vld [vmem:[%s3] sm:$0xff]
    %73 = vrot.lane.b32.xlu0 %v55, 17
    %v74 = vpop.permute.xlu0 %73
    %75 = vrot.lane.b32.xlu0 %v56, 17
    %v76 = vpop.permute.xlu0 %75
    %77 = vrot.lane.b32.xlu0 %v57, 17
    %v78 = vpop.permute.xlu0 %77
    %79 = vrot.lane.b32.xlu0 %v58, 17
    %v80 = vpop.permute.xlu0 %79
    %vm81 = vcmask 138240
    %v82 = vsel %vm81, %v74, %v76
    %v83 = vsel %vm81, %v76, %v78
    %v84 = vsel %vm81, %v78, %v80
    %v89 = vsel %vm81, 0.0, %v74
    %v90 = vperm.slane %v59, 0
    %v91 = vperm.slane %v60, 0
    %v92 = vperm.slane %v61, 0
    %v93 = vperm.slane %v62, 0
    %v94 = vmul.f32 %v89, %v90
    %v95 = vmul.f32 %v82, %v91
    %v96 = vmul.f32 %v83, %v92
    %v97 = vmul.f32 %v84, %v93
    %98 = vrot.lane.b32.xlu0 %v55, 16
    %v99 = vpop.permute.xlu0 %98
    %100 = vrot.lane.b32.xlu0 %v56, 16
    %v101 = vpop.permute.xlu0 %100
    %102 = vrot.lane.b32.xlu0 %v57, 16
    %v103 = vpop.permute.xlu0 %102
    %104 = vrot.lane.b32.xlu0 %v58, 16
    %v105 = vpop.permute.xlu0 %104
    %vm106 = vcmask 130048
    %v107 = vsel %vm106, %v99, %v101
    %v108 = vsel %vm106, %v101, %v103
    %v109 = vsel %vm106, %v103, %v105
    %v114 = vsel %vm106, 0.0, %v99
    %v115 = vperm.slane %v59, 1
    %v116 = vperm.slane %v60, 1
    %v117 = vperm.slane %v61, 1
    %v118 = vperm.slane %v62, 1
    %v119 = vmul.f32 %v114, %v115
    %v120 = vmul.f32 %v107, %v116
    %v121 = vmul.f32 %v108, %v117
    %v122 = vmul.f32 %v109, %v118
    %123 = vrot.lane.b32.xlu0 %v55, 15
    %v124 = vpop.permute.xlu0 %123
    %125 = vrot.lane.b32.xlu0 %v56, 15
    %v126 = vpop.permute.xlu0 %125
    %127 = vrot.lane.b32.xlu0 %v57, 15
    %v128 = vpop.permute.xlu0 %127
    %129 = vrot.lane.b32.xlu0 %v58, 15
    %v130 = vpop.permute.xlu0 %129
    %vm131 = vcmask 121856
    %v132 = vsel %vm131, %v124, %v126
    %v133 = vsel %vm131, %v126, %v128
    %v134 = vsel %vm131, %v128, %v130
    %v139 = vsel %vm131, 0.0, %v124
    %v140 = vperm.slane %v59, 2
    %v141 = vperm.slane %v60, 2
    %v142 = vperm.slane %v61, 2
    %v143 = vperm.slane %v62, 2
    %v144 = vmul.f32 %v139, %v140
    %v145 = vmul.f32 %v132, %v141
    %v146 = vmul.f32 %v133, %v142
    %v147 = vmul.f32 %v134, %v143
    %148 = vrot.lane.b32.xlu0 %v55, 1
    %v149 = vpop.permute.xlu0 %148
    %150 = vrot.lane.b32.xlu0 %v56, 1
    %v151 = vpop.permute.xlu0 %150
    %152 = vrot.lane.b32.xlu0 %v57, 1
    %v153 = vpop.permute.xlu0 %152
    %154 = vrot.lane.b32.xlu0 %v58, 1
    %v155 = vpop.permute.xlu0 %154
    %vm156 = vcmask 7168
    %v157 = vsel %vm156, %v149, %v151
    %v158 = vsel %vm156, %v151, %v153
    %v159 = vsel %vm156, %v153, %v155
    %v164 = vsel %vm156, 0.0, %v149
    %v165 = vperm.slane %v59, 3
    %v166 = vperm.slane %v60, 3
    %v167 = vperm.slane %v61, 3
    %v168 = vperm.slane %v62, 3
    %v169 = vmul.f32 %v164, %v165
    %v170 = vmul.f32 %v157, %v166
    %v171 = vmul.f32 %v158, %v167
    %v172 = vmul.f32 %v159, %v168
    %v173 = vperm.slane %v59, 4
    %v174 = vperm.slane %v60, 4
    %v175 = vperm.slane %v61, 4
    %v176 = vperm.slane %v62, 4
    %v177 = vmul.f32 %v55, %v173
    %v178 = vmul.f32 %v56, %v174
    %v179 = vmul.f32 %v57, %v175
    %v180 = vmul.f32 %v58, %v176
    %181 = vrot.lane.b32.xlu0 %v55, 127
    %v182 = vpop.permute.xlu0 %181
    %183 = vrot.lane.b32.xlu0 %v56, 127
    %v184 = vpop.permute.xlu0 %183
    %185 = vrot.lane.b32.xlu0 %v57, 127
    %v186 = vpop.permute.xlu0 %185
    %187 = vrot.lane.b32.xlu0 %v58, 127
    %v188 = vpop.permute.xlu0 %187
    %vm189 = vcmask 1039360
    %v190 = vsel %vm189, %v182, %v184
    %v191 = vsel %vm189, %v184, %v186
    %v192 = vsel %vm189, %v186, %v188
    %v197 = vsel %vm189, %v188, 0.0
    %v198 = vperm.slane %v59, 5
    %v199 = vperm.slane %v60, 5
    %v200 = vperm.slane %v61, 5
    %v201 = vperm.slane %v62, 5
    %v202 = vmul.f32 %v190, %v198
    %v203 = vmul.f32 %v191, %v199
    %v204 = vmul.f32 %v192, %v200
    %v205 = vmul.f32 %v197, %v201
    %206 = vrot.lane.b32.xlu0 %v55, 113
    %v207 = vpop.permute.xlu0 %206
    %208 = vrot.lane.b32.xlu0 %v56, 113
    %v209 = vpop.permute.xlu0 %208
    %210 = vrot.lane.b32.xlu0 %v57, 113
    %v211 = vpop.permute.xlu0 %210
    %212 = vrot.lane.b32.xlu0 %v58, 113
    %v213 = vpop.permute.xlu0 %212
    %vm214 = vcmask 924672
    %v215 = vsel %vm214, %v207, %v209
    %v216 = vsel %vm214, %v209, %v211
    %v217 = vsel %vm214, %v211, %v213
    %v222 = vsel %vm214, %v213, 0.0
    %v223 = vperm.slane %v59, 6
    %v224 = vperm.slane %v60, 6
    %v225 = vperm.slane %v61, 6
    %v226 = vperm.slane %v62, 6
    %v227 = vmul.f32 %v215, %v223
    %v228 = vmul.f32 %v216, %v224
    %v229 = vmul.f32 %v217, %v225
    %v230 = vmul.f32 %v222, %v226
    %231 = vrot.lane.b32.xlu0 %v55, 112
    %v232 = vpop.permute.xlu0 %231
    %233 = vrot.lane.b32.xlu0 %v56, 112
    %v234 = vpop.permute.xlu0 %233
    %235 = vrot.lane.b32.xlu0 %v57, 112
    %v236 = vpop.permute.xlu0 %235
    %237 = vrot.lane.b32.xlu0 %v58, 112
    %v238 = vpop.permute.xlu0 %237
    %vm239 = vcmask 916480
    %v240 = vsel %vm239, %v232, %v234
    %v241 = vsel %vm239, %v234, %v236
    %v242 = vsel %vm239, %v236, %v238
    %v247 = vsel %vm239, %v238, 0.0
    %v248 = vperm.slane %v59, 7
    %v249 = vperm.slane %v60, 7
    %v250 = vperm.slane %v61, 7
    %v251 = vperm.slane %v62, 7
    %v252 = vmul.f32 %v240, %v248
    %v253 = vmul.f32 %v241, %v249
    %v254 = vmul.f32 %v242, %v250
    %v255 = vmul.f32 %v247, %v251
    %256 = vrot.lane.b32.xlu0 %v55, 111
    %v257 = vpop.permute.xlu0 %256
    %258 = vrot.lane.b32.xlu0 %v56, 111
    %v259 = vpop.permute.xlu0 %258
    %260 = vrot.lane.b32.xlu0 %v57, 111
    %v261 = vpop.permute.xlu0 %260
    %262 = vrot.lane.b32.xlu0 %v58, 111
    %v263 = vpop.permute.xlu0 %262
    %vm264 = vcmask 908288
    %v265 = vsel %vm264, %v257, %v259
    %v266 = vsel %vm264, %v259, %v261
    %v267 = vsel %vm264, %v261, %v263
    %v272 = vsel %vm264, %v263, 0.0
    %v273 = vperm.slane %v63, 0
    %v274 = vperm.slane %v64, 0
    %v275 = vperm.slane %v65, 0
    %v276 = vperm.slane %v66, 0
    %v277 = vmul.f32 %v265, %v273
    %v278 = vmul.f32 %v266, %v274
    %v279 = vmul.f32 %v267, %v275
    %v280 = vmul.f32 %v272, %v276
    %v281 = vpack.c.bf16 %v67, %v67
    %v282 = vpack.c.bf16 %v119, %v94
    %v283 = vpack.c.bf16 %v120, %v95
    %v284 = vpack.c.bf16 %v121, %v96
    %v285 = vpack.c.bf16 %v122, %v97
    %v286 = vpack.c.bf16 %v169, %v144
    %v287 = vpack.c.bf16 %v170, %v145
    %v288 = vpack.c.bf16 %v171, %v146
    %v289 = vpack.c.bf16 %v172, %v147
    %v290 = vpack.c.bf16 %v202, %v177
    %v291 = vpack.c.bf16 %v203, %v178
    %v292 = vpack.c.bf16 %v204, %v179
    %v293 = vpack.c.bf16 %v205, %v180
    %v294 = vpack.c.bf16 %v252, %v227
    %v295 = vpack.c.bf16 %v253, %v228
    %v296 = vpack.c.bf16 %v254, %v229
    %v297 = vpack.c.bf16 %v255, %v230
    %v298 = vpack.c.bf16 %v277, %v277
    %v299 = vpack.c.bf16 %v278, %v278
    %v300 = vpack.c.bf16 %v279, %v279
    %v301 = vpack.c.bf16 %v280, %v280
    %303 = vset.pattern.permute.xlu0 0
    %304 = vperm.xlu0 %303, %v68
    %v305 = vpop.permute.xlu0 %304
    %vm307 = vcmask 588800
    %v309 = vsel %vm307, %v281, 0
    %vm311 = vcmask 1043456
    %v313 = vsel %vm311, %v298, 0
    %v316 = vsel %vm311, %v299, 0
    %v319 = vsel %vm311, %v300, 0
    %v322 = vsel %vm311, %v301, 0
    %324 = vmatpush.bf16.msra.mxu0 0
    %325 = vmatpush.bf16.msra.mxu0 0
    %326 = vmatpush.bf16.msra.mxu0 0
    %327 = vmatpush.bf16.msra.mxu0 %v313
    %328 = vmatpush.bf16.msra.mxu0 %v294
    %329 = vmatpush.bf16.msra.mxu0 %v290
    %330 = vmatpush.bf16.msra.mxu0 %v286
    %331 = vmatpush.bf16.msra.mxu0 %v282
    %332 = vmatmul.bf16.gmra.mxu0 %v309
    %v333 = vpop.f32.mrf.mxu0
    %v334 = vadd.f32 %v305, %v333
    %v335 = vpop.f32.mrf.mxu0
    %336 = vdwg.mxu0
    %337 = vmatpush.bf16.msra.mxu0 0
    %338 = vmatpush.bf16.msra.mxu0 0
    %339 = vmatpush.bf16.msra.mxu0 0
    %340 = vmatpush.bf16.msra.mxu0 %v316
    %341 = vmatpush.bf16.msra.mxu0 %v295
    %342 = vmatpush.bf16.msra.mxu0 %v291
    %343 = vmatpush.bf16.msra.mxu0 %v287
    %344 = vmatpush.bf16.msra.mxu0 %v283
    %345 = vmatmul.bf16.gmra.mxu0 %v309
    %v346 = vpop.f32.mrf.mxu0
    %v347 = vadd.f32 %v305, %v346
    %v348 = vpop.f32.mrf.mxu0
    %349 = vdwg.mxu0
    %350 = vmatpush.bf16.msra.mxu0 0
    %351 = vmatpush.bf16.msra.mxu0 0
    %352 = vmatpush.bf16.msra.mxu0 0
    %353 = vmatpush.bf16.msra.mxu0 %v319
    %354 = vmatpush.bf16.msra.mxu0 %v296
    %355 = vmatpush.bf16.msra.mxu0 %v292
    %356 = vmatpush.bf16.msra.mxu0 %v288
    %357 = vmatpush.bf16.msra.mxu0 %v284
    %358 = vmatmul.bf16.gmra.mxu0 %v309
    %v359 = vpop.f32.mrf.mxu0
    %v360 = vadd.f32 %v305, %v359
    %v361 = vpop.f32.mrf.mxu0
    %362 = vdwg.mxu0
    %363 = vmatpush.bf16.msra.mxu0 0
    %364 = vmatpush.bf16.msra.mxu0 0
    %365 = vmatpush.bf16.msra.mxu0 0
    %366 = vmatpush.bf16.msra.mxu0 %v322
    %367 = vmatpush.bf16.msra.mxu0 %v297
    %368 = vmatpush.bf16.msra.mxu0 %v293
    %369 = vmatpush.bf16.msra.mxu0 %v289
    %370 = vmatpush.bf16.msra.mxu0 %v285
    %371 = vmatmul.bf16.gmra.mxu0 %v309
    %v372 = vpop.f32.mrf.mxu0
    %v373 = vadd.f32 %v305, %v372
    %v374 = vpop.f32.mrf.mxu0
    %375 = vdwg.mxu0
    %v376 = vmax.f32 %v334, 0.0
    %v377 = vmax.f32 %v347, 0.0
    %v378 = vmax.f32 %v360, 0.0
    %v379 = vmax.f32 %v373, 0.0
    %v380 = vld [vmem:[#allocation2] sm:$0xff]
    %v381 = vld [vmem:[#allocation2 + $0x8] sm:$0xff]
    %v382 = vld [vmem:[#allocation2 + $0x10] sm:$0xff]
    %v383 = vld [vmem:[#allocation2 + $0x18] sm:$0xff]
    %v384 = vld [vmem:[#allocation2 + $0x20] sm:$0xff]
    %v385 = vld [vmem:[#allocation2 + $0x28] sm:$0xff]
    %v386 = vld [vmem:[#allocation2 + $0x30] sm:$0xff]
    %v387 = vld [vmem:[#allocation2 + $0x38] sm:$0xff]
    %v388 = vld [vmem:[#allocation2 + $0x40] sm:$0xff]
    %v389 = vld [vmem:[#allocation2 + $0x48] sm:$0xff]
    %v390 = vld [vmem:[#allocation2 + $0x50] sm:$0xff]
    %v391 = vld [vmem:[#allocation2 + $0x58] sm:$0xff]
    %v392 = vld [vmem:[#allocation2 + $0x60] sm:$0xff]
    %v393 = vld [vmem:[#allocation2 + $0x68] sm:$0xff]
    %v394 = vld [vmem:[#allocation2 + $0x70] sm:$0xff]
    %v395 = vld [vmem:[#allocation2 + $0x78] sm:$0xff]
    %v396 = vld [vmem:[#allocation2 + $0x80] sm:$0xff]
    %v397 = vld [vmem:[#allocation2 + $0x88] sm:$0xff]
    %v398 = vld [vmem:[#allocation2 + $0x90] sm:$0xff]
    %v399 = vld [vmem:[#allocation2 + $0x98] sm:$0xff]
    %v400 = vld [vmem:[#allocation2 + $0xa0] sm:$0xff]
    %v401 = vld [vmem:[#allocation2 + $0xa8] sm:$0xff]
    %v402 = vld [vmem:[#allocation2 + $0xb0] sm:$0xff]
    %v403 = vld [vmem:[#allocation2 + $0xb8] sm:$0xff]
    %v404 = vld [vmem:[#allocation2 + $0xc0] sm:$0xff]
    %v405 = vld [vmem:[#allocation2 + $0xc8] sm:$0xff]
    %v406 = vld [vmem:[#allocation2 + $0xd0] sm:$0xff]
    %v407 = vld [vmem:[#allocation2 + $0xd8] sm:$0xff]
    %v408 = vld [vmem:[#allocation2 + $0xe0] sm:$0xff]
    %v409 = vld [vmem:[#allocation2 + $0xe8] sm:$0xff]
    %v410 = vld [vmem:[#allocation2 + $0xf0] sm:$0xff]
    %v411 = vld [vmem:[#allocation2 + $0xf8] sm:$0xff]
    %v412 = vld [vmem:[#allocation2 + $0x100] sm:$0xff]
    %v413 = vld [vmem:[#allocation2 + $0x108] sm:$0xff]
    %v414 = vld [vmem:[#allocation2 + $0x110] sm:$0xff]
    %v415 = vld [vmem:[#allocation2 + $0x118] sm:$0xff]
    %v416 = vld [vmem:[#allocation2 + $0x120] sm:$0xff]
    %v417 = vld [vmem:[#allocation2 + $0x128] sm:$0xff]
    %v418 = vld [vmem:[#allocation2 + $0x130] sm:$0xff]
    %v419 = vld [vmem:[#allocation2 + $0x138] sm:$0xff]
    %v420 = vld [vmem:[#allocation2 + $0x140] sm:$0xff]
    %v421 = vld [vmem:[#allocation2 + $0x148] sm:$0xff]
    %v422 = vld [vmem:[#allocation2 + $0x150] sm:$0xff]
    %v423 = vld [vmem:[#allocation2 + $0x158] sm:$0xff]
    %v424 = vld [vmem:[#allocation2 + $0x160] sm:$0xff]
    %v425 = vld [vmem:[#allocation2 + $0x168] sm:$0xff]
    %v426 = vld [vmem:[#allocation2 + $0x170] sm:$0xff]
    %v427 = vld [vmem:[#allocation2 + $0x178] sm:$0xff]
    %v428 = vld [vmem:[#allocation2 + $0x180] sm:$0xff]
    %v429 = vld [vmem:[#allocation2 + $0x188] sm:$0xff]
    %v430 = vld [vmem:[#allocation2 + $0x190] sm:$0xff]
    %v431 = vld [vmem:[#allocation2 + $0x198] sm:$0xff]
    %v432 = vld [vmem:[#allocation2 + $0x1a0] sm:$0xff]
    %v433 = vld [vmem:[#allocation2 + $0x1a8] sm:$0xff]
    %v434 = vld [vmem:[#allocation2 + $0x1b0] sm:$0xff]
    %v435 = vld [vmem:[#allocation2 + $0x1b8] sm:$0xff]
    %v436 = vld [vmem:[#allocation2 + $0x1c0] sm:$0xff]
    %v437 = vld [vmem:[#allocation2 + $0x1c8] sm:$0xff]
    %v438 = vld [vmem:[#allocation2 + $0x1d0] sm:$0xff]
    %v439 = vld [vmem:[#allocation2 + $0x1d8] sm:$0xff]
    %v440 = vld [vmem:[#allocation2 + $0x1e0] sm:$0xff]
    %v441 = vld [vmem:[#allocation2 + $0x1e8] sm:$0xff]
    %v442 = vld [vmem:[#allocation2 + $0x1f0] sm:$0xff]
    %v443 = vld [vmem:[#allocation2 + $0x1f8] sm:$0xff]
    %448 = vrot.lane.b32.xlu0 %v376, 127
    %v449 = vpop.permute.xlu0 %448
    %450 = vrot.lane.b32.xlu0 %v377, 127
    %v451 = vpop.permute.xlu0 %450
    %452 = vrot.lane.b32.xlu0 %v378, 127
    %v453 = vpop.permute.xlu0 %452
    %454 = vrot.lane.b32.xlu0 %v379, 127
    %v455 = vpop.permute.xlu0 %454
    %v456 = vsel %vm189, %v449, %v451
    %v457 = vsel %vm189, %v451, %v453
    %v458 = vsel %vm189, %v453, %v455
    %v463 = vsel %vm189, %v455, 0.0
    %v464 = vmax.f32 %v376, %v456
    %v465 = vmax.f32 %v377, %v457
    %v466 = vmax.f32 %v378, %v458
    %v467 = vmax.f32 %v379, %v463
    %468 = vrot.lane.b32.xlu0 %v376, 112
    %v469 = vpop.permute.xlu0 %468
    %470 = vrot.lane.b32.xlu0 %v377, 112
    %v471 = vpop.permute.xlu0 %470
    %472 = vrot.lane.b32.xlu0 %v378, 112
    %v473 = vpop.permute.xlu0 %472
    %474 = vrot.lane.b32.xlu0 %v379, 112
    %v475 = vpop.permute.xlu0 %474
    %v476 = vsel %vm239, %v469, %v471
    %v477 = vsel %vm239, %v471, %v473
    %v478 = vsel %vm239, %v473, %v475
    %v483 = vsel %vm239, %v475, 0.0
    %v484 = vmax.f32 %v464, %v476
    %v485 = vmax.f32 %v465, %v477
    %v486 = vmax.f32 %v466, %v478
    %v487 = vmax.f32 %v467, %v483
    %488 = vrot.lane.b32.xlu0 %v376, 111
    %v489 = vpop.permute.xlu0 %488
    %490 = vrot.lane.b32.xlu0 %v377, 111
    %v491 = vpop.permute.xlu0 %490
    %492 = vrot.lane.b32.xlu0 %v378, 111
    %v493 = vpop.permute.xlu0 %492
    %494 = vrot.lane.b32.xlu0 %v379, 111
    %v495 = vpop.permute.xlu0 %494
    %v496 = vsel %vm264, %v489, %v491
    %v497 = vsel %vm264, %v491, %v493
    %v498 = vsel %vm264, %v493, %v495
    %v503 = vsel %vm264, %v495, 0.0
    %v504 = vmax.f32 %v484, %v496
    %v505 = vmax.f32 %v485, %v497
    %v506 = vmax.f32 %v486, %v498
    %v507 = vmax.f32 %v487, %v503
    %v508 = vpack.c.bf16 %v504, %v504
    %v509 = vpack.c.bf16 %v505, %v505
    %v510 = vpack.c.bf16 %v506, %v506
    %v511 = vpack.c.bf16 %v507, %v507
    %v512 = vpack.c.bf16 %v381, %v380
    %v513 = vpack.c.bf16 %v383, %v382
    %v514 = vpack.c.bf16 %v385, %v384
    %v515 = vpack.c.bf16 %v387, %v386
    %v516 = vpack.c.bf16 %v389, %v388
    %v517 = vpack.c.bf16 %v391, %v390
    %v518 = vpack.c.bf16 %v393, %v392
    %v519 = vpack.c.bf16 %v395, %v394
    %v520 = vpack.c.bf16 %v397, %v396
    %v521 = vpack.c.bf16 %v399, %v398
    %v522 = vpack.c.bf16 %v401, %v400
    %v523 = vpack.c.bf16 %v403, %v402
    %v524 = vpack.c.bf16 %v405, %v404
    %v525 = vpack.c.bf16 %v407, %v406
    %v526 = vpack.c.bf16 %v409, %v408
    %v527 = vpack.c.bf16 %v411, %v410
    %v528 = vpack.c.bf16 %v413, %v412
    %v529 = vpack.c.bf16 %v415, %v414
    %v530 = vpack.c.bf16 %v417, %v416
    %v531 = vpack.c.bf16 %v419, %v418
    %v532 = vpack.c.bf16 %v421, %v420
    %v533 = vpack.c.bf16 %v423, %v422
    %v534 = vpack.c.bf16 %v425, %v424
    %v535 = vpack.c.bf16 %v427, %v426
    %v536 = vpack.c.bf16 %v429, %v428
    %v537 = vpack.c.bf16 %v431, %v430
    %v538 = vpack.c.bf16 %v433, %v432
    %v539 = vpack.c.bf16 %v435, %v434
    %v540 = vpack.c.bf16 %v437, %v436
    %v541 = vpack.c.bf16 %v439, %v438
    %v542 = vpack.c.bf16 %v441, %v440
    %v543 = vpack.c.bf16 %v443, %v442
    %544 = vmatpush.bf16.msra.mxu0 %v519
    %545 = vmatpush.bf16.msra.mxu0 %v518
    %546 = vmatpush.bf16.msra.mxu0 %v517
    %547 = vmatpush.bf16.msra.mxu0 %v516
    %548 = vmatpush.bf16.msra.mxu0 %v515
    %549 = vmatpush.bf16.msra.mxu0 %v514
    %550 = vmatpush.bf16.msra.mxu0 %v513
    %551 = vmatpush.bf16.msra.mxu0 %v512
    %552 = vmatmul.bf16.gmra.mxu0 %v508
    %v553 = vpop.f32.mrf.mxu0
    %v554 = vadd.f32 0.0, %v553
    %v555 = vpop.f32.mrf.mxu0
    %556 = vdwg.mxu0
    %557 = vmatpush.bf16.msra.mxu0 %v527
    %558 = vmatpush.bf16.msra.mxu0 %v526
    %559 = vmatpush.bf16.msra.mxu0 %v525
    %560 = vmatpush.bf16.msra.mxu0 %v524
    %561 = vmatpush.bf16.msra.mxu0 %v523
    %562 = vmatpush.bf16.msra.mxu0 %v522
    %563 = vmatpush.bf16.msra.mxu0 %v521
    %564 = vmatpush.bf16.msra.mxu0 %v520
    %565 = vmatmul.bf16.gmra.mxu0 %v509
    %v566 = vpop.f32.mrf.mxu0
    %v567 = vadd.f32 %v554, %v566
    %v568 = vpop.f32.mrf.mxu0
    %569 = vdwg.mxu0
    %570 = vmatpush.bf16.msra.mxu0 %v535
    %571 = vmatpush.bf16.msra.mxu0 %v534
    %572 = vmatpush.bf16.msra.mxu0 %v533
    %573 = vmatpush.bf16.msra.mxu0 %v532
    %574 = vmatpush.bf16.msra.mxu0 %v531
    %575 = vmatpush.bf16.msra.mxu0 %v530
    %576 = vmatpush.bf16.msra.mxu0 %v529
    %577 = vmatpush.bf16.msra.mxu0 %v528
    %578 = vmatmul.bf16.gmra.mxu0 %v510
    %v579 = vpop.f32.mrf.mxu0
    %v580 = vadd.f32 %v567, %v579
    %v581 = vpop.f32.mrf.mxu0
    %582 = vdwg.mxu0
    %583 = vmatpush.bf16.msra.mxu0 %v543
    %584 = vmatpush.bf16.msra.mxu0 %v542
    %585 = vmatpush.bf16.msra.mxu0 %v541
    %586 = vmatpush.bf16.msra.mxu0 %v540
    %587 = vmatpush.bf16.msra.mxu0 %v539
    %588 = vmatpush.bf16.msra.mxu0 %v538
    %589 = vmatpush.bf16.msra.mxu0 %v537
    %590 = vmatpush.bf16.msra.mxu0 %v536
    %591 = vmatmul.bf16.gmra.mxu0 %v511
    %v592 = vpop.f32.mrf.mxu0
    %v593 = vadd.f32 %v580, %v592
    %v594 = vpop.f32.mrf.mxu0
    %595 = vdwg.mxu0
    %v596 = vld [vmem:[%s5] sm:$0xff]
    %v597 = vld [vmem:[%s5 + $0x8] sm:$0x1]
    %v598 = vld [vmem:[%s6] sm:$0xff]
    %v599 = vld [vmem:[%s6 + $0x8] sm:$0xff]
    %v600 = vld [vmem:[%s7] sm:$0xff]
    %v601 = vld [vmem:[%s7 + $0x8] sm:$0xff]
    %603 = vrot.lane.b32.xlu0 %v593, 9
    %v604 = vpop.permute.xlu0 %603
    %vm606 = vcmask 72704
    %v607 = vsel %vm606, 0.0, %v604
    %v608 = vperm.slane %v596, 0
    %v609 = vmul.f32 %v607, %v608
    %610 = vrot.lane.b32.xlu0 %v593, 8
    %v611 = vpop.permute.xlu0 %610
    %vm613 = vcmask 64512
    %v614 = vsel %vm613, 0.0, %v611
    %v615 = vperm.slane %v596, 1
    %v616 = vmul.f32 %v614, %v615
    %617 = vrot.lane.b32.xlu0 %v593, 7
    %v618 = vpop.permute.xlu0 %617
    %vm620 = vcmask 56320
    %v621 = vsel %vm620, 0.0, %v618
    %v622 = vperm.slane %v596, 2
    %v623 = vmul.f32 %v621, %v622
    %624 = vrot.lane.b32.xlu0 %v593, 1
    %v625 = vpop.permute.xlu0 %624
    %v627 = vsel %vm156, 0.0, %v625
    %v628 = vperm.slane %v596, 3
    %v629 = vmul.f32 %v627, %v628
    %v630 = vperm.slane %v596, 4
    %v631 = vmul.f32 %v593, %v630
    %632 = vrot.lane.b32.xlu0 %v593, 127
    %v633 = vpop.permute.xlu0 %632
    %v635 = vsel %vm189, %v633, 0.0
    %v636 = vperm.slane %v596, 5
    %v637 = vmul.f32 %v635, %v636
    %638 = vrot.lane.b32.xlu0 %v593, 121
    %v639 = vpop.permute.xlu0 %638
    %vm641 = vcmask 990208
    %v642 = vsel %vm641, %v639, 0.0
    %v643 = vperm.slane %v596, 6
    %v644 = vmul.f32 %v642, %v643
    %645 = vrot.lane.b32.xlu0 %v593, 120
    %v646 = vpop.permute.xlu0 %645
    %vm648 = vcmask 982016
    %v649 = vsel %vm648, %v646, 0.0
    %v650 = vperm.slane %v596, 7
    %v651 = vmul.f32 %v649, %v650
    %652 = vrot.lane.b32.xlu0 %v593, 119
    %v653 = vpop.permute.xlu0 %652
    %vm655 = vcmask 973824
    %v656 = vsel %vm655, %v653, 0.0
    %v657 = vperm.slane %v597, 0
    %v658 = vmul.f32 %v656, %v657
    %v659 = vpack.c.bf16 %v599, %v598
    %v660 = vpack.c.bf16 %v616, %v609
    %v661 = vpack.c.bf16 %v629, %v623
    %v662 = vpack.c.bf16 %v637, %v631
    %v663 = vpack.c.bf16 %v651, %v644
    %v664 = vpack.c.bf16 %v658, %v658
    %666 = vset.pattern.permute.xlu0 0
    %667 = vperm.xlu0 %666, %v600
    %v668 = vpop.permute.xlu0 %667
    %671 = vset.pattern.permute.xlu0 0
    %672 = vperm.xlu0 %671, %v601
    %v673 = vpop.permute.xlu0 %672
    %v676 = vsel %vm307, %v659, 0
    %v679 = vsel %vm311, %v664, 0
    %681 = vmatpush.bf16.msra.mxu0 0
    %682 = vmatpush.bf16.msra.mxu0 0
    %683 = vmatpush.bf16.msra.mxu0 0
    %684 = vmatpush.bf16.msra.mxu0 %v679
    %685 = vmatpush.bf16.msra.mxu0 %v663
    %686 = vmatpush.bf16.msra.mxu0 %v662
    %687 = vmatpush.bf16.msra.mxu0 %v661
    %688 = vmatpush.bf16.msra.mxu0 %v660
    %689 = vmatmul.bf16.gmra.mxu0 %v676
    %v690 = vpop.f32.mrf.mxu0
    %v691 = vadd.f32 %v668, %v690
    %v692 = vpop.f32.mrf.mxu0
    %v693 = vadd.f32 %v673, %v692
    %694 = vdwg.mxu0
    %v695 = vmax.f32 %v691, 0.0
    %v696 = vmax.f32 %v693, 0.0
    %v697 = vld [vmem:[%s8] sm:$0xff]
    %v698 = vld [vmem:[%s8 + $0x8] sm:$0xff]
    %v699 = vld [vmem:[%s8 + $0x10] sm:$0xff]
    %v700 = vld [vmem:[%s8 + $0x18] sm:$0xff]
    %v701 = vld [vmem:[%s8 + $0x20] sm:$0xff]
    %v702 = vld [vmem:[%s8 + $0x28] sm:$0xff]
    %v703 = vld [vmem:[%s8 + $0x30] sm:$0xff]
    %v704 = vld [vmem:[%s8 + $0x38] sm:$0xff]
    %v705 = vld [vmem:[%s8 + $0x40] sm:$0xff]
    %v706 = vld [vmem:[%s8 + $0x48] sm:$0xff]
    %v707 = vld [vmem:[%s8 + $0x50] sm:$0xff]
    %v708 = vld [vmem:[%s8 + $0x58] sm:$0xff]
    %v709 = vld [vmem:[%s8 + $0x60] sm:$0xff]
    %v710 = vld [vmem:[%s8 + $0x68] sm:$0xff]
    %v711 = vld [vmem:[%s8 + $0x70] sm:$0xff]
    %v712 = vld [vmem:[%s8 + $0x78] sm:$0xff]
    %v713 = vld [vmem:[%s9] sm:$0xff]
    %v714 = vld [vmem:[%s9 + $0x8] sm:$0x3]
    %v715 = vld [vmem:[%s10] sm:$0xff]
    %v716 = vld [vmem:[%s10 + $0x8] sm:$0x3]
    %717 = vmatpush.msra.mxu0 %v712
    %718 = vmatpush.msra.mxu0 %v711
    %719 = vmatpush.msra.mxu0 %v710
    %720 = vmatpush.msra.mxu0 %v709
    %721 = vmatpush.msra.mxu0 %v708
    %722 = vmatpush.msra.mxu0 %v707
    %723 = vmatpush.msra.mxu0 %v706
    %724 = vmatpush.msra.mxu0 %v705
    %725 = vmatpush.msra.mxu0 %v704
    %726 = vmatpush.msra.mxu0 %v703
    %727 = vmatpush.msra.mxu0 %v702
    %728 = vmatpush.msra.mxu0 %v701
    %729 = vmatpush.msra.mxu0 %v700
    %730 = vmatpush.msra.mxu0 %v699
    %731 = vmatpush.msra.mxu0 %v698
    %732 = vmatpush.msra.mxu0 %v697
    %733 = vmatmul.f32.gmra.mxu0 %v695
    %v734 = vpop.f32.mrf.mxu0
    %v735 = vadd.f32 0.0, %v734
    %736 = vmatmul.f32.gmra.mxu0 %v696
    %v737 = vpop.f32.mrf.mxu0
    %v738 = vadd.f32 0.0, %v737
    %739 = vdwg.mxu0
    %741 = vset.pattern.permute.xlu0 0
    %742 = vperm.xlu0 %741, %v715
    %v743 = vpop.permute.xlu0 %742
    %746 = vset.pattern.permute.xlu0 0
    %747 = vperm.xlu0 %746, %v716
    %v748 = vpop.permute.xlu0 %747
    %v751 = vsel %vm106, %v713, 0
    %v754 = vsel %vm106, %v714, 0
    %756 = vmatpush.msra.mxu0 0.0
    %757 = vmatpush.msra.mxu0 0.0
    %758 = vmatpush.msra.mxu0 0.0
    %759 = vmatpush.msra.mxu0 0.0
    %760 = vmatpush.msra.mxu0 0.0
    %761 = vmatpush.msra.mxu0 0.0
    %762 = vmatpush.msra.mxu0 0.0
    %763 = vmatpush.msra.mxu0 0.0
    %764 = vmatpush.msra.mxu0 0.0
    %765 = vmatpush.msra.mxu0 0.0
    %766 = vmatpush.msra.mxu0 0.0
    %767 = vmatpush.msra.mxu0 0.0
    %768 = vmatpush.msra.mxu0 0.0
    %769 = vmatpush.msra.mxu0 0.0
    %770 = vmatpush.msra.mxu0 %v738
    %771 = vmatpush.msra.mxu0 %v735
    %772 = vmatmul.f32.gmra.mxu0 %v751
    %v773 = vpop.f32.mrf.mxu0
    %v774 = vadd.f32 %v743, %v773
    %775 = vmatmul.f32.gmra.mxu0 %v754
    %v776 = vpop.f32.mrf.mxu0
    %v777 = vadd.f32 %v748, %v776
    %778 = vdwg.mxu0
    %vm779 = vcmask 15360
    %780 = vst.msk [vmem:[%s11] sm:$0xff] %vm779, %v774
    %vm781 = vcmask 9216
    %782 = vst.msk [vmem:[%s11 + $0x8] sm:$0x3] %vm781, %v777
    // Predicated region
    $region50: #{tpu_custom_call.1} parent=1 // pred_check
      _
    $region51: #{tpu_custom_call.1} parent=1 // pred_check_branch
      %784 = sbr.rel (0) target = $region53
    $region52: #{tpu_custom_call.1} parent=1 // pred_region
      _
    $region53: #{tpu_custom_call.1} parent=1 // pred_fallthru
      _
    // Predicated region
    $region54: #{tpu_custom_call.1} parent=1 // pred_check
      _
    $region55: #{tpu_custom_call.1} parent=1 // pred_check_branch
      %786 = sbr.rel (0) target = $region57
    $region56: #{tpu_custom_call.1} parent=1 // pred_region
      _
    $region57: #{tpu_custom_call.1} parent=1 // pred_fallthru
      _
    %787 = vsyncpa [#allocation3], 1

</llo_original>
